<compile_context>
chip_gen: v5e
topology: v5e:2x2
jax: 0.10.0
libtpu: 0.0.40
codegen_flags: <defaults>
</compile_context>

<pallas_src>
import jax
import jax.numpy as jnp
from jax.experimental import pallas as pl
from jax.experimental.pallas import tpu as pltpu


def _matmul_kernel(x_ref, w_ref, o_ref):
    # One MXU matmul per tile: (TM, Kp) @ (Kp, Pp) -> (TM, Pp), f32 accumulate.
    o_ref[...] = jnp.dot(
        x_ref[...], w_ref[...], preferred_element_type=jnp.float32
    ).astype(o_ref.dtype)


def _round_up(x, m):
    return ((x + m - 1) // m) * m


def special_last_layer(x, weight, *, tm_max=512):
    """
    x:      (N, 1, H, in_p)     float32   (NCHW, C=1, W=in_p)
    weight: (out_p, 1, 1, in_p) float32   (Conv2d weight, bias=False)
    returns (N, 1, H, out_p)    float32   (== conv output after moveaxis(0,-1).T)
    """
    N, C, H, in_p = x.shape
    assert C == 1, "Special_last_layer expects in_channels == 1"
    out_p = weight.shape[0]
    assert weight.shape == (out_p, 1, 1, in_p)

    M = N * H

    # Lane-packing factor: view `pf` consecutive in_p-wide rows as one 128-lane row.
    if in_p <= 128 and 128 % in_p == 0:
        pf = 128 // in_p
    else:
        pf = 1  # TODO(synk): in_p not dividing 128 falls back to the unpacked layout.

    kp = pf * in_p      # packed K (== 128 when packing is active)
    pp = pf * out_p     # packed output lane width

    # Packed-row tiling: tm packed rows per grid step (tm multiple of 8).
    rows = (M + pf - 1) // pf
    tm = min(tm_max, _round_up(rows, 8))
    rows_p = _round_up(rows, tm)

    # Pad the flat input so the packed view tiles evenly (zeros -> sliced off later).
    x2d = x.reshape(M, in_p)
    m_pad = rows_p * pf
    if m_pad != M:
        x2d = jnp.pad(x2d, ((0, m_pad - M), (0, 0)))
    x_packed = x2d.reshape(rows_p, kp)  # pure row-major reshape, same HBM bytes

    # Block-diagonal weight: pf copies of W^T along the diagonal -> (kp, pp).
    w2d = jnp.transpose(weight.reshape(out_p, in_p))        # (in_p, out_p)
    if pf > 1:
        wbd = jnp.kron(jnp.eye(pf, dtype=w2d.dtype), w2d)   # (kp, pp)
    else:
        wbd = w2d

    cost = pl.CostEstimate(
        flops=2 * M * in_p * out_p,
        transcendentals=0,
        bytes_accessed=4 * (M * in_p + in_p * out_p + M * out_p),
    )

    out_packed = pl.pallas_call(
        _matmul_kernel,
        out_shape=jax.ShapeDtypeStruct((rows_p, pp), jnp.float32),
        grid=(rows_p // tm,),
        in_specs=[
            pl.BlockSpec((tm, kp), lambda i: (i, 0)),
            pl.BlockSpec((kp, pp), lambda i: (0, 0)),   # weight stays VMEM-resident
        ],
        out_specs=pl.BlockSpec((tm, pp), lambda i: (i, 0)),
        compiler_params=pltpu.CompilerParams(
            dimension_semantics=("parallel",),          # megacore-shardable on v7x
            vmem_limit_bytes=32 * 1024 * 1024,
        ),
        cost_estimate=cost,
    )(x_packed, wbd)

    # (rows_p, pf*out_p) row-major == (rows_p*pf, out_p) row-major by construction
    # of the block-diagonal weight; drop the padded rows.
    out2d = out_packed.reshape(rows_p * pf, out_p)[:M]
    return out2d.reshape(N, H, out_p)[:, None, :, :]


def special_last_layer_ref(x, weight):
    # Pure-JAX reference of the PyTorch forward (conv-as-matmul + axis shuffle).
    N, _, H, in_p = x.shape
    out_p = weight.shape[0]
    w2d = weight.reshape(out_p, in_p)
    y = jnp.einsum("nhw,ow->nho", x[:, 0, :, :], w2d)
    return y[:, None, :, :]


if __name__ == "__main__":
    # Small deterministic shapes consistent with the module:
    # batch N=2, points H=8, in_p_size=16, out_p_size=32.
    N, H, in_p, out_p = 2, 8, 16, 32

    key = jax.random.PRNGKey(0)
    kx, kw = jax.random.split(key)
    x = jax.random.normal(kx, (N, 1, H, in_p), dtype=jnp.float32)
    weight = jax.random.normal(kw, (out_p, 1, 1, in_p), dtype=jnp.float32) * 0.1

    fwd = jax.jit(special_last_layer)
    out = jax.block_until_ready(fwd(x, weight))

    ref = special_last_layer_ref(x, weight)
    assert out.shape == (N, 1, H, out_p), out.shape
    assert jnp.allclose(out, ref, atol=1e-5, rtol=1e-5), "mismatch vs reference"

    print("KERNEL_OK")
</pallas_src>

<mosaic_0001>
module attributes {stable_mosaic.version = 11 : i64} {
  func.func @_matmul_kernel(%arg0: i32, %arg1: memref<8x128xf32, #tpu.memory_space<vmem>>, %arg2: memref<128x256xf32, #tpu.memory_space<vmem>>, %arg3: memref<8x256xf32, #tpu.memory_space<vmem>>) attributes {dimension_semantics = [#tpu.dimension_semantics<parallel>], iteration_bounds = array<i64: 1>, scalar_prefetch = 0 : i64, scratch_operands = 0 : i64, tpu.core_type = #tpu.core_type<tc>, window_params = [{transform_indices = @transform_0, window_bounds = array<i64: 8, 128>}, {pipeline_mode = #tpu.pipeline_mode<synchronous>, transform_indices = @transform_1, window_bounds = array<i64: 128, 256>}, {transform_indices = @transform_2, window_bounds = array<i64: 8, 256>}]} {
    %c0 = arith.constant 0 : index
    %c0_0 = arith.constant 0 : index
    %0 = vector.load %arg1[%c0, %c0_0] : memref<8x128xf32, #tpu.memory_space<vmem>>, vector<8x128xf32>
    %c0_1 = arith.constant 0 : index
    %c0_2 = arith.constant 0 : index
    %1 = vector.load %arg2[%c0_1, %c0_2] : memref<128x256xf32, #tpu.memory_space<vmem>>, vector<128x256xf32>
    %cst = arith.constant dense<0.000000e+00> : vector<8x256xf32>
    %2 = tpu.matmul %0, %1, %cst {dimension_numbers = #tpu.dot_dimension_numbers<[1], [0], [0], [1], [0, 0, 1, 1], [], []>} : vector<8x128xf32>, vector<128x256xf32>, vector<8x256xf32> -> vector<8x256xf32>
    %c0_3 = arith.constant 0 : index
    %c0_4 = arith.constant 0 : index
    %3 = vector.load %arg3[%c0_3, %c0_4] : memref<8x256xf32, #tpu.memory_space<vmem>>, vector<8x256xf32>
    tpu.vector_store %arg3[%c0_3, %c0_4], %2 {strides = array<i32>} : memref<8x256xf32, #tpu.memory_space<vmem>>, vector<8x256xf32>,
    return
  }
  func.func @transform_0(%arg0: i32) -> (i32, i32) {
    %c0_i32 = arith.constant 0 : i32
    %c0_i32_0 = arith.constant 0 : i32
    return %arg0, %c0_i32 : i32, i32
  }
  func.func @transform_1(%arg0: i32) -> (i32, i32) {
    %c0_i32 = arith.constant 0 : i32
    %c0_i32_0 = arith.constant 0 : i32
    %c0_i32_1 = arith.constant 0 : i32
    return %c0_i32, %c0_i32_0 : i32, i32
  }
  func.func @transform_2(%arg0: i32) -> (i32, i32) {
    %c0_i32 = arith.constant 0 : i32
    %c0_i32_0 = arith.constant 0 : i32
    return %arg0, %c0_i32 : i32, i32
  }
}

</mosaic_0001>

<llo_original>
// kernel: special_last_layer.1
$region0: #{special_last_layer.1}
  #allocation0 [shape = 'u32[]', space=smem, size = 0x4, offset = 0x4, fixed_abs, tag = 'smem constant byte address 0x4 - core index']
  #allocation1 [shape = 'u32[72,128]{1,0:T(1,128)}', space=vmem, size = 0x9000, scoped, tag = 'internal scratch']
  %s0 = inlined_call_operand.vmem [shape: f32[8,128], index: 0, kind: input, shape index: {}]
  %s1 = inlined_call_operand.vmem [shape: f32[128,256], index: 1, kind: input, shape index: {}]
  %s2 = inlined_call_operand.vmem [shape: f32[8,256], index: 2, kind: output, shape index: {}]
  %s3 = sld [smem:[#allocation0]]
  $region18: #{special_last_layer.1} parent=0
    _
  %s5 = ssub.s32 1, %s3
  %s6 = scalar_select 0, %s5, %s3
  // Predicated region
  $region2: #{special_last_layer.1} parent=0 // pred_check
    _
  $region3: #{special_last_layer.1} parent=0 // pred_check_branch
    %8 = sbr.rel (0) target = $region5
  $region4: #{special_last_layer.1} parent=0 // pred_region
    _
  $region5: #{special_last_layer.1} parent=0 // pred_fallthru
    _
  // Predicated region
  $region6: #{special_last_layer.1} parent=0 // pred_check
    _
  $region7: #{special_last_layer.1} parent=0 // pred_check_branch
    %10 = sbr.rel (0) target = $region9
  $region8: #{special_last_layer.1} parent=0 // pred_region
    _
  $region9: #{special_last_layer.1} parent=0 // pred_fallthru
    _
  %v11 = vld [vmem:[%s0] sm:$0xff]
  %v12 = vld [vmem:[%s1] sm:$0xff]
  %v13 = vld [vmem:[%s1 + $0x8] sm:$0xff]
  %v14 = vld [vmem:[%s1 + $0x10] sm:$0xff]
  %v15 = vld [vmem:[%s1 + $0x18] sm:$0xff]
  %v16 = vld [vmem:[%s1 + $0x20] sm:$0xff]
  %v17 = vld [vmem:[%s1 + $0x28] sm:$0xff]
  %v18 = vld [vmem:[%s1 + $0x30] sm:$0xff]
  %v19 = vld [vmem:[%s1 + $0x38] sm:$0xff]
  %v20 = vld [vmem:[%s1 + $0x40] sm:$0xff]
  %v21 = vld [vmem:[%s1 + $0x48] sm:$0xff]
  %v22 = vld [vmem:[%s1 + $0x50] sm:$0xff]
  %v23 = vld [vmem:[%s1 + $0x58] sm:$0xff]
  %v24 = vld [vmem:[%s1 + $0x60] sm:$0xff]
  %v25 = vld [vmem:[%s1 + $0x68] sm:$0xff]
  %v26 = vld [vmem:[%s1 + $0x70] sm:$0xff]
  %v27 = vld [vmem:[%s1 + $0x78] sm:$0xff]
  %v28 = vld [vmem:[%s1 + $0x80] sm:$0xff]
  %v29 = vld [vmem:[%s1 + $0x88] sm:$0xff]
  %v30 = vld [vmem:[%s1 + $0x90] sm:$0xff]
  %v31 = vld [vmem:[%s1 + $0x98] sm:$0xff]
  %v32 = vld [vmem:[%s1 + $0xa0] sm:$0xff]
  %v33 = vld [vmem:[%s1 + $0xa8] sm:$0xff]
  %v34 = vld [vmem:[%s1 + $0xb0] sm:$0xff]
  %v35 = vld [vmem:[%s1 + $0xb8] sm:$0xff]
  %v36 = vld [vmem:[%s1 + $0xc0] sm:$0xff]
  %v37 = vld [vmem:[%s1 + $0xc8] sm:$0xff]
  %v38 = vld [vmem:[%s1 + $0xd0] sm:$0xff]
  %v39 = vld [vmem:[%s1 + $0xd8] sm:$0xff]
  %v40 = vld [vmem:[%s1 + $0xe0] sm:$0xff]
  %v41 = vld [vmem:[%s1 + $0xe8] sm:$0xff]
  %v42 = vld [vmem:[%s1 + $0xf0] sm:$0xff]
  %v43 = vld [vmem:[%s1 + $0xf8] sm:$0xff]
  %44 = vmatpush.msra.mxu0 %v42
  %45 = vmatpush.msra.mxu0 %v40
  %46 = vmatpush.msra.mxu0 %v38
  %47 = vmatpush.msra.mxu0 %v36
  %48 = vmatpush.msra.mxu0 %v34
  %49 = vmatpush.msra.mxu0 %v32
  %50 = vmatpush.msra.mxu0 %v30
  %51 = vmatpush.msra.mxu0 %v28
  %52 = vmatpush.msra.mxu0 %v26
  %53 = vmatpush.msra.mxu0 %v24
  %54 = vmatpush.msra.mxu0 %v22
  %55 = vmatpush.msra.mxu0 %v20
  %56 = vmatpush.msra.mxu0 %v18
  %57 = vmatpush.msra.mxu0 %v16
  %58 = vmatpush.msra.mxu0 %v14
  %59 = vmatpush.msra.mxu0 %v12
  %60 = vmatmul.f32.gmra.mxu0 %v11
  %v61 = vpop.f32.mrf.mxu0
  %v62 = vadd.f32 0.0, %v61
  %63 = vdwg.mxu0
  %64 = vmatpush.msra.mxu0 %v43
  %65 = vmatpush.msra.mxu0 %v41
  %66 = vmatpush.msra.mxu0 %v39
  %67 = vmatpush.msra.mxu0 %v37
  %68 = vmatpush.msra.mxu0 %v35
  %69 = vmatpush.msra.mxu0 %v33
  %70 = vmatpush.msra.mxu0 %v31
  %71 = vmatpush.msra.mxu0 %v29
  %72 = vmatpush.msra.mxu0 %v27
  %73 = vmatpush.msra.mxu0 %v25
  %74 = vmatpush.msra.mxu0 %v23
  %75 = vmatpush.msra.mxu0 %v21
  %76 = vmatpush.msra.mxu0 %v19
  %77 = vmatpush.msra.mxu0 %v17
  %78 = vmatpush.msra.mxu0 %v15
  %79 = vmatpush.msra.mxu0 %v13
  %80 = vmatmul.f32.gmra.mxu0 %v11
  %v81 = vpop.f32.mrf.mxu0
  %v82 = vadd.f32 0.0, %v81
  %83 = vdwg.mxu0
  %84 = vst [vmem:[%s2] sm:$0xff] %v62
  %85 = vst [vmem:[%s2 + $0x8] sm:$0xff] %v82
  // Predicated region
  $region10: #{special_last_layer.1} parent=0 // pred_check
    _
  $region11: #{special_last_layer.1} parent=0 // pred_check_branch
    %87 = sbr.rel (0) target = $region13
  $region12: #{special_last_layer.1} parent=0 // pred_region
    _
  $region13: #{special_last_layer.1} parent=0 // pred_fallthru
    _
  // Predicated region
  $region14: #{special_last_layer.1} parent=0 // pred_check
    _
  $region15: #{special_last_layer.1} parent=0 // pred_check_branch
    %89 = sbr.rel (0) target = $region17
  $region16: #{special_last_layer.1} parent=0 // pred_region
    _
  $region17: #{special_last_layer.1} parent=0 // pred_fallthru
    _

</llo_original>
